<compile_context>
chip_gen: v7x
topology: tpu7x:2x2x1
jax: 0.10.0
libtpu: 0.0.40
codegen_flags: <defaults>
</compile_context>

<pallas_src>
import functools

import jax
import jax.numpy as jnp
from jax.experimental import pallas as pl
from jax.experimental.pallas import tpu as pltpu


def mhsa_kernel(x_ref, wqkv_ref, bqkv_ref, wout_ref, bout_ref, o_ref, *,
                num_heads, n, batch_block, scaling, matmul_dtype):
    """One grid step = `batch_block` batch elements, tokens pre-flattened.

    x_ref:    (batch_block * n, E)
    wqkv_ref: (E, 3E)      bqkv_ref: (1, 3E)
    wout_ref: (E, E)       bout_ref: (1, E)
    o_ref:    (batch_block * n, E)
    """
    tb = batch_block
    e = x_ref.shape[-1]
    hd = e // num_heads

    # ---- QKV projection: one big (tb*n, E) @ (E, 3E) MXU matmul ------------
    x2 = x_ref[...]
    qkv = jnp.dot(x2.astype(matmul_dtype), wqkv_ref[...],
                  preferred_element_type=jnp.float32)
    qkv = qkv + bqkv_ref[...]                       # (tb*n, 3E) f32

    # torch reshape (N, 3, H, hd): the 3E axis splits as [3, H, hd].
    q = qkv[:, 0:e] * scaling                       # scale q before scores
    k = qkv[:, e:2 * e]
    v = qkv[:, 2 * e:3 * e]

    # ---- Gather per-(batch-element, head) tiles into one leading batch axis.
    # Result shape (tb*H, n, hd); built only from aligned static slices and a
    # leading-axis concat (no second-minor transposes), so it lowers cleanly,
    # while both attention matmuls below run as a single batched einsum.
    def to_batched_heads(t):                        # (tb*n, E) -> (tb*H, n, hd)
        parts = []
        for b in range(tb):
            rows = t[b * n:(b + 1) * n, :]          # (n, E), sublane-aligned
            for h in range(num_heads):
                parts.append(rows[:, h * hd:(h + 1) * hd].reshape(1, n, hd))
        return jnp.concatenate(parts, axis=0)

    q3 = to_batched_heads(q).astype(matmul_dtype)   # (tb*H, n, hd)
    k3 = to_batched_heads(k).astype(matmul_dtype)
    v3 = to_batched_heads(v).astype(matmul_dtype)

    # ---- Scores + softmax (f32 math) ---------------------------------------
    s = jnp.einsum('bqd,bkd->bqk', q3, k3,
                   preferred_element_type=jnp.float32)        # (tb*H, n, n)
    s = s - jnp.max(s, axis=-1, keepdims=True)
    p = jnp.exp(s)
    p = p * pl.reciprocal(jnp.sum(p, axis=-1, keepdims=True), approx=True)
    # NOTE: for large N (real MobileViT patch counts) this (n, n) score block
    # should be replaced by an online-softmax (flash-style) loop over KV tiles.

    ctx = jnp.einsum('bqk,bkd->bqd', p.astype(matmul_dtype), v3,
                     preferred_element_type=jnp.float32)      # (tb*H, n, hd)

    # ---- Merge heads back: (tb*H, n, hd) -> (tb*n, E) ----------------------
    # Head h of batch element b occupies columns [h*hd:(h+1)*hd], matching
    # torch's out.transpose(1, 2).reshape(b, n, E).
    row_blocks = []
    for b in range(tb):
        heads = [ctx[b * num_heads + h] for h in range(num_heads)]  # (n, hd)
        row_blocks.append(jnp.concatenate(heads, axis=-1))          # (n, E)
    merged = jnp.concatenate(row_blocks, axis=0)                    # (tb*n, E)

    # ---- Output projection --------------------------------------------------
    out = jnp.dot(merged.astype(matmul_dtype), wout_ref[...],
                  preferred_element_type=jnp.float32)
    out = out + bout_ref[...]
    # NOTE: E < 128 means this store is not lane-dense; padding E to 128 (or
    # flattening N*E) trades extra HBM bytes / relayout for unmasked vst and
    # was intentionally not applied at these shapes.
    o_ref[...] = out.astype(o_ref.dtype)


def _pick_batch_block(batch, max_block=8):
    """Largest divisor of `batch` (<= max_block) that leaves >= 2 grid steps,
    so the batch axis can be sharded across both TensorCores on v7x."""
    divisors = [t for t in range(min(batch, max_block), 0, -1) if batch % t == 0]
    for t in divisors:
        if batch // t >= 2:
            return t
    return divisors[0]


def mhsa(x, wqkv, bqkv, wout, bout, *, num_heads, batch_block=None,
         matmul_dtype=None):
    """x: (B, N, E).  wqkv: (E, 3E) (pre-transposed), bqkv: (3E,),
    wout: (E, E) (pre-transposed), bout: (E,).

    matmul_dtype: optional dtype (e.g. jnp.bfloat16) for MXU operands on
    v6e/v7x; softmax / accumulation always stay float32.
    """
    b, n, e = x.shape
    assert e % num_heads == 0
    hd = e // num_heads
    scaling = float(hd) ** -0.5
    out_dtype = x.dtype

    tb = _pick_batch_block(b) if batch_block is None else batch_block
    assert b % tb == 0, "batch must be divisible by batch_block"
    grid = (b // tb,)

    if matmul_dtype is not None:
        # Cast weights once in the wrapper (halves their HBM/VMEM traffic).
        wqkv = wqkv.astype(matmul_dtype)
        wout = wout.astype(matmul_dtype)
    mm_dtype = matmul_dtype if matmul_dtype is not None else x.dtype

    # Flatten (B, N) -> tokens outside the kernel (free on HBM) so blocks are
    # simple 2-D (tb*n, E) tiles and no in-kernel fold/unfold is needed.
    x_tok = x.reshape(b * n, e)
    bqkv2 = bqkv.reshape(1, 3 * e).astype(jnp.float32)
    bout2 = bout.reshape(1, e).astype(jnp.float32)

    kernel = functools.partial(
        mhsa_kernel, num_heads=num_heads, n=n, batch_block=tb,
        scaling=scaling, matmul_dtype=mm_dtype)

    out_flat = pl.pallas_call(
        kernel,
        out_shape=jax.ShapeDtypeStruct((b * n, e), out_dtype),
        grid_spec=pltpu.PrefetchScalarGridSpec(
            num_scalar_prefetch=0,
            grid=grid,
            in_specs=[
                pl.BlockSpec((tb * n, e), lambda i: (i, 0)),
                pl.BlockSpec((e, 3 * e), lambda i: (0, 0)),   # resident weights
                pl.BlockSpec((1, 3 * e), lambda i: (0, 0)),
                pl.BlockSpec((e, e), lambda i: (0, 0)),
                pl.BlockSpec((1, e), lambda i: (0, 0)),
            ],
            out_specs=pl.BlockSpec((tb * n, e), lambda i: (i, 0)),
        ),
        compiler_params=pltpu.CompilerParams(
            dimension_semantics=("parallel",),
            # Explicit scoped-VMEM budget; tiny blocks here, but keeps sizing
            # honest on v7x (64 MiB physical) while safe on v5e/v6e.
            vmem_limit_bytes=32 * 1024 * 1024,
        ),
    )(x_tok, wqkv, bqkv2, wout, bout2)

    return out_flat.reshape(b, n, e)


def mhsa_ref(x, wqkv, bqkv, wout, bout, *, num_heads):
    """Pure-JAX reference mirroring the PyTorch forward exactly."""
    b, n, e = x.shape
    hd = e // num_heads
    qkv = x @ wqkv + bqkv                                   # (B, N, 3E)
    qkv = qkv.reshape(b, n, 3, num_heads, hd)
    qkv = jnp.transpose(qkv, (0, 3, 2, 1, 4))               # (B, H, 3, N, hd)
    q, k, v = qkv[:, :, 0], qkv[:, :, 1], qkv[:, :, 2]
    q = q * (hd ** -0.5)
    attn = jnp.einsum("bhnd,bhmd->bhnm", q, k)
    attn = jax.nn.softmax(attn, axis=-1)
    out = jnp.einsum("bhnm,bhmd->bhnd", attn, v)            # (B, H, N, hd)
    out = jnp.transpose(out, (0, 2, 1, 3)).reshape(b, n, e)
    return out @ wout + bout


if __name__ == "__main__":
    batch, n_patches, embed_dim, num_heads = 2, 8, 32, 4

    key = jax.random.PRNGKey(0)
    kx, k1, k2, k3, k4 = jax.random.split(key, 5)

    x = jax.random.normal(kx, (batch, n_patches, embed_dim), dtype=jnp.float32)
    # nn.Linear(E, 3E): stored pre-transposed (E, 3E) so y = x @ W + b.
    wqkv = jax.random.normal(k1, (embed_dim, 3 * embed_dim), jnp.float32) * 0.05
    bqkv = jax.random.normal(k2, (3 * embed_dim,), jnp.float32) * 0.05
    wout = jax.random.normal(k3, (embed_dim, embed_dim), jnp.float32) * 0.05
    bout = jax.random.normal(k4, (embed_dim,), jnp.float32) * 0.05

    ref = mhsa_ref(x, wqkv, bqkv, wout, bout, num_heads=num_heads)

    # f32 path (B=2 -> batch_block=1, 2 parallel grid steps).
    out = jax.block_until_ready(
        mhsa(x, wqkv, bqkv, wout, bout, num_heads=num_heads))
    assert out.shape == (batch, n_patches, embed_dim)
    # approx reciprocal in the softmax -> ~1e-3-level error vs exact reference.
    assert jnp.allclose(out, ref, atol=1e-2, rtol=1e-2), "f32 mismatch vs reference"

    # bf16 MXU-operand path (v6e/v7x); softmax/accumulation stay f32.
    out_bf16 = jax.block_until_ready(
        mhsa(x, wqkv, bqkv, wout, bout, num_heads=num_heads,
             matmul_dtype=jnp.bfloat16))
    assert jnp.allclose(out_bf16, ref, atol=5e-2, rtol=5e-2), "bf16 mismatch"

    # Larger batch to exercise batch_block > 1 (several batch elems per step).
    xb = jax.random.normal(jax.random.PRNGKey(1),
                           (8, n_patches, embed_dim), jnp.float32)
    refb = mhsa_ref(xb, wqkv, bqkv, wout, bout, num_heads=num_heads)
    outb = jax.block_until_ready(
        mhsa(xb, wqkv, bqkv, wout, bout, num_heads=num_heads))
    assert jnp.allclose(outb, refb, atol=1e-2, rtol=1e-2), "blocked-batch mismatch"

    print("KERNEL_OK")
</pallas_src>

<mosaic_0001>
module attributes {stable_mosaic.version = 11 : i64} {
  func.func @mhsa_kernel(%arg0: i32, %arg1: memref<8x32xf32, #tpu.memory_space<vmem>>, %arg2: memref<32x96xf32, #tpu.memory_space<vmem>>, %arg3: memref<1x96xf32, #tpu.memory_space<vmem>>, %arg4: memref<32x32xf32, #tpu.memory_space<vmem>>, %arg5: memref<1x32xf32, #tpu.memory_space<vmem>>, %arg6: memref<8x32xf32, #tpu.memory_space<vmem>>) attributes {dimension_semantics = [#tpu.dimension_semantics<parallel>], iteration_bounds = array<i64: 2>, scalar_prefetch = 0 : i64, scratch_operands = 0 : i64, tpu.core_type = #tpu.core_type<tc>, window_params = [{transform_indices = @transform_0, window_bounds = array<i64: 8, 32>}, {pipeline_mode = #tpu.pipeline_mode<synchronous>, transform_indices = @transform_1, window_bounds = array<i64: 32, 96>}, {pipeline_mode = #tpu.pipeline_mode<synchronous>, transform_indices = @transform_2, window_bounds = array<i64: 1, 96>}, {pipeline_mode = #tpu.pipeline_mode<synchronous>, transform_indices = @transform_3, window_bounds = array<i64: 32, 32>}, {pipeline_mode = #tpu.pipeline_mode<synchronous>, transform_indices = @transform_4, window_bounds = array<i64: 1, 32>}, {transform_indices = @transform_5, window_bounds = array<i64: 8, 32>}]} {
    %c0 = arith.constant 0 : index
    %c0_0 = arith.constant 0 : index
    %0 = vector.load %arg1[%c0, %c0_0] : memref<8x32xf32, #tpu.memory_space<vmem>>, vector<8x32xf32>
    %c0_1 = arith.constant 0 : index
    %c0_2 = arith.constant 0 : index
    %1 = vector.load %arg2[%c0_1, %c0_2] : memref<32x96xf32, #tpu.memory_space<vmem>>, vector<32x96xf32>
    %cst = arith.constant dense<0.000000e+00> : vector<8x96xf32>
    %2 = tpu.matmul %0, %1, %cst {dimension_numbers = #tpu.dot_dimension_numbers<[1], [0], [0], [1], [0, 0, 1, 1], [], []>} : vector<8x32xf32>, vector<32x96xf32>, vector<8x96xf32> -> vector<8x96xf32>
    %c0_3 = arith.constant 0 : index
    %c0_4 = arith.constant 0 : index
    %3 = vector.load %arg3[%c0_3, %c0_4] : memref<1x96xf32, #tpu.memory_space<vmem>>, vector<1x96xf32>
    %4 = vector.broadcast %3 : vector<1x96xf32> to vector<8x96xf32>
    %5 = arith.addf %2, %4 : vector<8x96xf32>
    %6 = vector.extract_strided_slice %5 {offsets = [0, 0], sizes = [8, 32], strides = [1, 1]} : vector<8x96xf32> to vector<8x32xf32>
    %cst_5 = arith.constant 0.353553385 : f32
    %7 = vector.broadcast %cst_5 : f32 to vector<8x32xf32>
    %8 = arith.mulf %6, %7 : vector<8x32xf32>
    %9 = vector.extract_strided_slice %5 {offsets = [0, 32], sizes = [8, 32], strides = [1, 1]} : vector<8x96xf32> to vector<8x32xf32>
    %10 = vector.extract_strided_slice %5 {offsets = [0, 64], sizes = [8, 32], strides = [1, 1]} : vector<8x96xf32> to vector<8x32xf32>
    %11 = vector.extract_strided_slice %8 {offsets = [0, 0], sizes = [8, 8], strides = [1, 1]} : vector<8x32xf32> to vector<8x8xf32>
    %12 = vector.shape_cast %11 : vector<8x8xf32> to vector<1x8x8xf32>
    %13 = vector.extract_strided_slice %8 {offsets = [0, 8], sizes = [8, 8], strides = [1, 1]} : vector<8x32xf32> to vector<8x8xf32>
    %14 = vector.shape_cast %13 : vector<8x8xf32> to vector<1x8x8xf32>
    %15 = vector.extract_strided_slice %8 {offsets = [0, 16], sizes = [8, 8], strides = [1, 1]} : vector<8x32xf32> to vector<8x8xf32>
    %16 = vector.shape_cast %15 : vector<8x8xf32> to vector<1x8x8xf32>
    %17 = vector.extract_strided_slice %8 {offsets = [0, 24], sizes = [8, 8], strides = [1, 1]} : vector<8x32xf32> to vector<8x8xf32>
    %18 = vector.shape_cast %17 : vector<8x8xf32> to vector<1x8x8xf32>
    %19 = tpu.concatenate %12, %14, %16, %18 in 0 : vector<1x8x8xf32>, vector<1x8x8xf32>, vector<1x8x8xf32>, vector<1x8x8xf32> -> vector<4x8x8xf32>
    %20 = vector.extract_strided_slice %9 {offsets = [0, 0], sizes = [8, 8], strides = [1, 1]} : vector<8x32xf32> to vector<8x8xf32>
    %21 = vector.shape_cast %20 : vector<8x8xf32> to vector<1x8x8xf32>
    %22 = vector.extract_strided_slice %9 {offsets = [0, 8], sizes = [8, 8], strides = [1, 1]} : vector<8x32xf32> to vector<8x8xf32>
    %23 = vector.shape_cast %22 : vector<8x8xf32> to vector<1x8x8xf32>
    %24 = vector.extract_strided_slice %9 {offsets = [0, 16], sizes = [8, 8], strides = [1, 1]} : vector<8x32xf32> to vector<8x8xf32>
    %25 = vector.shape_cast %24 : vector<8x8xf32> to vector<1x8x8xf32>
    %26 = vector.extract_strided_slice %9 {offsets = [0, 24], sizes = [8, 8], strides = [1, 1]} : vector<8x32xf32> to vector<8x8xf32>
    %27 = vector.shape_cast %26 : vector<8x8xf32> to vector<1x8x8xf32>
    %28 = tpu.concatenate %21, %23, %25, %27 in 0 : vector<1x8x8xf32>, vector<1x8x8xf32>, vector<1x8x8xf32>, vector<1x8x8xf32> -> vector<4x8x8xf32>
    %29 = vector.extract_strided_slice %10 {offsets = [0, 0], sizes = [8, 8], strides = [1, 1]} : vector<8x32xf32> to vector<8x8xf32>
    %30 = vector.shape_cast %29 : vector<8x8xf32> to vector<1x8x8xf32>
    %31 = vector.extract_strided_slice %10 {offsets = [0, 8], sizes = [8, 8], strides = [1, 1]} : vector<8x32xf32> to vector<8x8xf32>
    %32 = vector.shape_cast %31 : vector<8x8xf32> to vector<1x8x8xf32>
    %33 = vector.extract_strided_slice %10 {offsets = [0, 16], sizes = [8, 8], strides = [1, 1]} : vector<8x32xf32> to vector<8x8xf32>
    %34 = vector.shape_cast %33 : vector<8x8xf32> to vector<1x8x8xf32>
    %35 = vector.extract_strided_slice %10 {offsets = [0, 24], sizes = [8, 8], strides = [1, 1]} : vector<8x32xf32> to vector<8x8xf32>
    %36 = vector.shape_cast %35 : vector<8x8xf32> to vector<1x8x8xf32>
    %37 = tpu.concatenate %30, %32, %34, %36 in 0 : vector<1x8x8xf32>, vector<1x8x8xf32>, vector<1x8x8xf32>, vector<1x8x8xf32> -> vector<4x8x8xf32>
    "tpu.trace_start"() <{level = 10 : i32, message = "bqd,bkd->bqk"}> : () -> ()
    %cst_6 = arith.constant dense<0.000000e+00> : vector<4x8x8xf32>
    %38 = tpu.matmul %19, %28, %cst_6 {dimension_numbers = #tpu.dot_dimension_numbers<[2], [2], [1], [1], [0, 0, 0, 1, 1, 1], [0], [0]>} : vector<4x8x8xf32>, vector<4x8x8xf32>, vector<4x8x8xf32> -> vector<4x8x8xf32>
    "tpu.trace_stop"() : () -> ()
    %cst_7 = arith.constant dense<0xFF800000> : vector<4x8xf32>
    %39 = vector.multi_reduction <maximumf>, %38, %cst_7 [2] : vector<4x8x8xf32> to vector<4x8xf32>
    %40 = vector.shape_cast %39 : vector<4x8xf32> to vector<4x8x1xf32>
    %41 = vector.broadcast %40 : vector<4x8x1xf32> to vector<4x8x8xf32>
    %42 = arith.subf %38, %41 : vector<4x8x8xf32>
    %43 = math.exp %42 : vector<4x8x8xf32>
    %cst_8 = arith.constant dense<0.000000e+00> : vector<4x8xf32>
    %44 = vector.multi_reduction <add>, %43, %cst_8 [2] : vector<4x8x8xf32> to vector<4x8xf32>
    %45 = vector.shape_cast %44 : vector<4x8xf32> to vector<4x8x1xf32>
    %46 = tpu.reciprocal %45 {approx = true} : vector<4x8x1xf32> -> vector<4x8x1xf32>
    %47 = vector.broadcast %46 : vector<4x8x1xf32> to vector<4x8x8xf32>
    %48 = arith.mulf %43, %47 : vector<4x8x8xf32>
    "tpu.trace_start"() <{level = 10 : i32, message = "bqk,bkd->bqd"}> : () -> ()
    %cst_9 = arith.constant dense<0.000000e+00> : vector<4x8x8xf32>
    %49 = tpu.matmul %48, %37, %cst_9 {dimension_numbers = #tpu.dot_dimension_numbers<[2], [1], [1], [2], [0, 0, 0, 1, 1, 2], [0], [0]>} : vector<4x8x8xf32>, vector<4x8x8xf32>, vector<4x8x8xf32> -> vector<4x8x8xf32>
    "tpu.trace_stop"() : () -> ()
    %50 = vector.extract_strided_slice %49 {offsets = [0, 0, 0], sizes = [1, 8, 8], strides = [1, 1, 1]} : vector<4x8x8xf32> to vector<1x8x8xf32>
    %51 = vector.shape_cast %50 : vector<1x8x8xf32> to vector<8x8xf32>
    %52 = vector.extract_strided_slice %49 {offsets = [1, 0, 0], sizes = [1, 8, 8], strides = [1, 1, 1]} : vector<4x8x8xf32> to vector<1x8x8xf32>
    %53 = vector.shape_cast %52 : vector<1x8x8xf32> to vector<8x8xf32>
    %54 = vector.extract_strided_slice %49 {offsets = [2, 0, 0], sizes = [1, 8, 8], strides = [1, 1, 1]} : vector<4x8x8xf32> to vector<1x8x8xf32>
    %55 = vector.shape_cast %54 : vector<1x8x8xf32> to vector<8x8xf32>
    %56 = vector.extract_strided_slice %49 {offsets = [3, 0, 0], sizes = [1, 8, 8], strides = [1, 1, 1]} : vector<4x8x8xf32> to vector<1x8x8xf32>
    %57 = vector.shape_cast %56 : vector<1x8x8xf32> to vector<8x8xf32>
    %58 = tpu.concatenate %51, %53, %55, %57 in 1 : vector<8x8xf32>, vector<8x8xf32>, vector<8x8xf32>, vector<8x8xf32> -> vector<8x32xf32>
    %c0_10 = arith.constant 0 : index
    %c0_11 = arith.constant 0 : index
    %59 = vector.load %arg4[%c0_10, %c0_11] : memref<32x32xf32, #tpu.memory_space<vmem>>, vector<32x32xf32>
    %cst_12 = arith.constant dense<0.000000e+00> : vector<8x32xf32>
    %60 = tpu.matmul %58, %59, %cst_12 {dimension_numbers = #tpu.dot_dimension_numbers<[1], [0], [0], [1], [0, 0, 1, 1], [], []>} : vector<8x32xf32>, vector<32x32xf32>, vector<8x32xf32> -> vector<8x32xf32>
    %c0_13 = arith.constant 0 : index
    %c0_14 = arith.constant 0 : index
    %61 = vector.load %arg5[%c0_13, %c0_14] : memref<1x32xf32, #tpu.memory_space<vmem>>, vector<1x32xf32>
    %62 = vector.broadcast %61 : vector<1x32xf32> to vector<8x32xf32>
    %63 = arith.addf %60, %62 : vector<8x32xf32>
    %c0_15 = arith.constant 0 : index
    %c0_16 = arith.constant 0 : index
    %64 = vector.load %arg6[%c0_15, %c0_16] : memref<8x32xf32, #tpu.memory_space<vmem>>, vector<8x32xf32>
    tpu.vector_store %arg6[%c0_15, %c0_16], %63 {strides = array<i32>} : memref<8x32xf32, #tpu.memory_space<vmem>>, vector<8x32xf32>,
    return
  }
  func.func @transform_0(%arg0: i32) -> (i32, i32) {
    %c0_i32 = arith.constant 0 : i32
    %c0_i32_0 = arith.constant 0 : i32
    return %arg0, %c0_i32 : i32, i32
  }
  func.func @transform_1(%arg0: i32) -> (i32, i32) {
    %c0_i32 = arith.constant 0 : i32
    %c0_i32_0 = arith.constant 0 : i32
    %c0_i32_1 = arith.constant 0 : i32
    return %c0_i32, %c0_i32_0 : i32, i32
  }
  func.func @transform_2(%arg0: i32) -> (i32, i32) {
    %c0_i32 = arith.constant 0 : i32
    %c0_i32_0 = arith.constant 0 : i32
    %c0_i32_1 = arith.constant 0 : i32
    return %c0_i32, %c0_i32_0 : i32, i32
  }
  func.func @transform_3(%arg0: i32) -> (i32, i32) {
    %c0_i32 = arith.constant 0 : i32
    %c0_i32_0 = arith.constant 0 : i32
    %c0_i32_1 = arith.constant 0 : i32
    return %c0_i32, %c0_i32_0 : i32, i32
  }
  func.func @transform_4(%arg0: i32) -> (i32, i32) {
    %c0_i32 = arith.constant 0 : i32
    %c0_i32_0 = arith.constant 0 : i32
    %c0_i32_1 = arith.constant 0 : i32
    return %c0_i32, %c0_i32_0 : i32, i32
  }
  func.func @transform_5(%arg0: i32) -> (i32, i32) {
    %c0_i32 = arith.constant 0 : i32
    %c0_i32_0 = arith.constant 0 : i32
    return %arg0, %c0_i32 : i32, i32
  }
}

</mosaic_0001>

<llo_original>
// kernel: tpu_custom_call.1
$region0: #{tpu_custom_call.1}
  #allocation0 [shape = 'u32[]', space=smem, size = 0x4, offset = 0x4, fixed_abs, tag = 'smem constant byte address 0x4 - core index']
  #allocation1 [shape = 'u32[144,128]{1,0:T(1,128)}', space=vmem, size = 0x12000, scoped, tag = 'internal scratch']
  %s0 = inlined_call_operand.hbm [shape: f32[16,32], index: 0, kind: input, shape index: {}]
  %s1 = inlined_call_operand.hbm [shape: f32[32,96], index: 1, kind: input, shape index: {}]
  %s2 = inlined_call_operand.vmem [shape: f32[1,96], index: 2, kind: input, shape index: {}]
  %s3 = inlined_call_operand.hbm [shape: f32[32,32], index: 3, kind: input, shape index: {}]
  %s4 = inlined_call_operand.vmem [shape: f32[1,32], index: 4, kind: input, shape index: {}]
  %s5 = inlined_call_operand.hbm [shape: f32[16,32], index: 5, kind: output, shape index: {}]
  %s6 = sld [smem:[#allocation0]]
  $region65: #{tpu_custom_call.1} parent=0
    _
  %s8 = ssub.s32 1, %s6
  %s9 = scalar_select 0, %s8, %s6
  $region1: #{tpu_custom_call.1} parent=0
    #allocation2 [shape = 'u8[8192]{0}', space=vmem, size = 0x2000, scoped, tag = 'input window, operand 0']
    #allocation3 [shape = 's32[2]{0}', space=sflag, size = 0x8, scoped, tag = 'scoped memory for tpu_custom_call.1']
    #allocation4 [shape = 's32[2]{0}', space=sflag, size = 0x8, scoped, tag = 'scoped memory for tpu_custom_call.1']
    #allocation5 [shape = 'u8[16384]{0}', space=vmem, size = 0x4000, scoped, tag = 'input window, operand 1, single buffered']
    #allocation6 [shape = 's32[1]{0}', space=sflag, size = 0x4, scoped, tag = 'scoped memory for tpu_custom_call.1']
    #allocation7 [shape = 'u8[16384]{0}', space=vmem, size = 0x4000, scoped, tag = 'input window, operand 3, single buffered']
    #allocation8 [shape = 'u8[8192]{0}', space=vmem, size = 0x2000, scoped, tag = 'output window, operand 0']
    %10 = vsyncpa [#allocation3], 0
    %s11 = scalar_lea.sflag [#allocation3], 1
    %12 = vsyncpa %s11, 0
    %13 = vsyncpa [#allocation6], 0
    %14 = vsyncpa [#allocation4], 0
    %s15 = scalar_lea.sflag [#allocation4], 1
    %16 = vsyncpa %s15, 0
    loop: start=0, step=1, limit=4
    $region2: #{tpu_custom_call.1} parent=1 // loop_pre_header
      _
    $region3: #{tpu_custom_call.1} parent=1 // loop_header
      %s18 = sphi 0, %s22
      %p19 = scmp.ge.s32.totalorder %s18, 4
      %s28 = sphi 0, %s30
      %s31 = sphi 0, %s28
      %s32 = sphi 0, %s31
      %s48 = sphi 0, %s32
      %s52 = sphi 0, %s52
      %s54 = sphi 0, %s52
      %s55 = sphi 0, %s54
      %s69 = sphi 0, %s55
      %s73 = sphi 0, %s73
      %s75 = sphi 0, %s73
      %s76 = sphi 0, %s75
      %s90 = sphi 0, %s76
      %s94 = sphi 0, %s94
      %s96 = sphi 0, %s94
      %s97 = sphi 0, %s96
      %s111 = sphi 0, %s97
      %s115 = sphi 0, %s115
      %s117 = sphi 0, %s115
      %s118 = sphi 0, %s117
      %s132 = sphi 0, %s118
      %s138 = sphi 0, %s140
      %s141 = sphi 0, %s138
      %s142 = sphi 0, %s141
      %s158 = sphi 0, %s142
    $region4: #{tpu_custom_call.1} parent=1 // loop_header_branch
      %21 = sbr.rel (%p19) target = $region8
    $region5: #{tpu_custom_call.1} parent=1 // loop_body
      %s23 = ssub.s32 %s18, 1
      %s24 = ssub.s32 %s18, 2
      %s25 = sadd.s32 %s18, 1
      %s26 = ssub.s32 %s18, %s25
      %p27 = scmp.eq.s32.totalorder %s26, 0
      %s29 = sadd.s32 %s28, 1
      %s30 = scalar_select %p27, %s28, %s29
      %p33 = pneg %p27
      %p34 = scmp.eq.s32.totalorder %s18, 1
      %p35 = por %p33, %p34
      %p36 = scmp.ne.s32.totalorder %s28, %s31
      %p37 = scmp.eq.s32.totalorder %s18, 0
      %p38 = por %p36, %p37
      %p39 = scmp.ne.s32.totalorder %s28, %s31
      %p40 = scmp.eq.s32.totalorder %s23, 1
      %p41 = por %p39, %p40
      %p42 = scmp.ne.s32.totalorder %s31, %s32
      %p43 = scmp.eq.s32.totalorder %s23, 0
      %p44 = por %p42, %p43
      %p45 = scmp.ne.s32.totalorder %s31, %s32
      %p46 = scmp.eq.s32.totalorder %s24, 1
      %p47 = por %p45, %p46
      %p49 = scmp.ne.s32.totalorder %s32, %s48
      %p50 = scmp.eq.s32.totalorder %s24, 0
      %p51 = por %p49, %p50
      %s53 = sadd.s32 %s52, 1
      %p56 = scmp.eq.s32.totalorder %s18, 1
      %p57 = scmp.ne.s32.totalorder %s52, %s54
      %p58 = scmp.eq.s32.totalorder %s18, 0
      %p59 = por %p57, %p58
      %p60 = scmp.ne.s32.totalorder %s52, %s54
      %p61 = scmp.eq.s32.totalorder %s23, 1
      %p62 = por %p60, %p61
      %p63 = scmp.ne.s32.totalorder %s54, %s55
      %p64 = scmp.eq.s32.totalorder %s23, 0
      %p65 = por %p63, %p64
      %p66 = scmp.ne.s32.totalorder %s54, %s55
      %p67 = scmp.eq.s32.totalorder %s24, 1
      %p68 = por %p66, %p67
      %p70 = scmp.ne.s32.totalorder %s55, %s69
      %p71 = scmp.eq.s32.totalorder %s24, 0
      %p72 = por %p70, %p71
      %s74 = sadd.s32 %s73, 1
      %p77 = scmp.eq.s32.totalorder %s18, 1
      %p78 = scmp.ne.s32.totalorder %s73, %s75
      %p79 = scmp.eq.s32.totalorder %s18, 0
      %p80 = por %p78, %p79
      %p81 = scmp.ne.s32.totalorder %s73, %s75
      %p82 = scmp.eq.s32.totalorder %s23, 1
      %p83 = por %p81, %p82
      %p84 = scmp.ne.s32.totalorder %s75, %s76
      %p85 = scmp.eq.s32.totalorder %s23, 0
      %p86 = por %p84, %p85
      %p87 = scmp.ne.s32.totalorder %s75, %s76
      %p88 = scmp.eq.s32.totalorder %s24, 1
      %p89 = por %p87, %p88
      %p91 = scmp.ne.s32.totalorder %s76, %s90
      %p92 = scmp.eq.s32.totalorder %s24, 0
      %p93 = por %p91, %p92
      %s95 = sadd.s32 %s94, 1
      %p98 = scmp.eq.s32.totalorder %s18, 1
      %p99 = scmp.ne.s32.totalorder %s94, %s96
      %p100 = scmp.eq.s32.totalorder %s18, 0
      %p101 = por %p99, %p100
      %p102 = scmp.ne.s32.totalorder %s94, %s96
      %p103 = scmp.eq.s32.totalorder %s23, 1
      %p104 = por %p102, %p103
      %p105 = scmp.ne.s32.totalorder %s96, %s97
      %p106 = scmp.eq.s32.totalorder %s23, 0
      %p107 = por %p105, %p106
      %p108 = scmp.ne.s32.totalorder %s96, %s97
      %p109 = scmp.eq.s32.totalorder %s24, 1
      %p110 = por %p108, %p109
      %p112 = scmp.ne.s32.totalorder %s97, %s111
      %p113 = scmp.eq.s32.totalorder %s24, 0
      %p114 = por %p112, %p113
      %s116 = sadd.s32 %s115, 1
      %p119 = scmp.eq.s32.totalorder %s18, 1
      %p120 = scmp.ne.s32.totalorder %s115, %s117
      %p121 = scmp.eq.s32.totalorder %s18, 0
      %p122 = por %p120, %p121
      %p123 = scmp.ne.s32.totalorder %s115, %s117
      %p124 = scmp.eq.s32.totalorder %s23, 1
      %p125 = por %p123, %p124
      %p126 = scmp.ne.s32.totalorder %s117, %s118
      %p127 = scmp.eq.s32.totalorder %s23, 0
      %p128 = por %p126, %p127
      %p129 = scmp.ne.s32.totalorder %s117, %s118
      %p130 = scmp.eq.s32.totalorder %s24, 1
      %p131 = por %p129, %p130
      %p133 = scmp.ne.s32.totalorder %s118, %s132
      %p134 = scmp.eq.s32.totalorder %s24, 0
      %p135 = por %p133, %p134
      %s136 = ssub.s32 %s18, %s25
      %p137 = scmp.eq.s32.totalorder %s136, 0
      %s139 = sadd.s32 %s138, 1
      %s140 = scalar_select %p137, %s138, %s139
      %p143 = pneg %p137
      %p144 = scmp.eq.s32.totalorder %s18, 1
      %p145 = por %p143, %p144
      %p146 = scmp.ne.s32.totalorder %s138, %s141
      %p147 = scmp.eq.s32.totalorder %s18, 0
      %p148 = por %p146, %p147
      %p149 = scmp.ne.s32.totalorder %s138, %s141
      %p150 = scmp.eq.s32.totalorder %s23, 1
      %p151 = por %p149, %p150
      %p152 = scmp.ne.s32.totalorder %s141, %s142
      %p153 = scmp.eq.s32.totalorder %s23, 0
      %p154 = por %p152, %p153
      %p155 = scmp.ne.s32.totalorder %s141, %s142
      %p156 = scmp.eq.s32.totalorder %s24, 1
      %p157 = por %p155, %p156
      %p159 = scmp.ne.s32.totalorder %s142, %s158
      %p160 = scmp.eq.s32.totalorder %s24, 0
      %p161 = por %p159, %p160
      %p162 = scmp.le.s32.totalorder 1, %s18
      %p163 = scmp.lt.s32.totalorder %s18, 3
      %p164 = pnand %p162, %p163
      %p165 = pneg %p164
      // Predicated region
      $region9: #{tpu_custom_call.1} parent=5 // pred_check
        _
      $region10: #{tpu_custom_call.1} parent=5 // pred_check_branch
        %167 = sbr.rel (%p164) target = $region12
      $region11: #{tpu_custom_call.1} parent=5 // pred_region
        %s168 = ssub.s32 %s18, 1
        // Predicated region
        $region13: #{tpu_custom_call.1} parent=11 // pred_check
          %p169 = pneg %p65
        $region14: #{tpu_custom_call.1} parent=11 // pred_check_branch
          %171 = sbr.rel (%p169) target = $region16
        $region15: #{tpu_custom_call.1} parent=11 // pred_region
          %s173 = ssub.s32 512, 512
          %174 = vsyncadd [#allocation6], %s173
          %s175 = sshll.u32 [#allocation5], 4
          %s176 = int_to_ptr.vmem [resolvable:$true] %s175
          %181 = dma.hbm_to_vmem [thread:$0]  %s1, 512, %s176, [#allocation6], 128, 128, 8
        $region16: #{tpu_custom_call.1} parent=11 // pred_fallthru
          _
        // Predicated region
        $region17: #{tpu_custom_call.1} parent=11 // pred_check
          %p182 = pneg %p86
        $region18: #{tpu_custom_call.1} parent=11 // pred_check_branch
          %184 = sbr.rel (%p182) target = $region20
        $region19: #{tpu_custom_call.1} parent=11 // pred_region
          _
        $region20: #{tpu_custom_call.1} parent=11 // pred_fallthru
          _
        // Predicated region
        $region21: #{tpu_custom_call.1} parent=11 // pred_check
          %p185 = pneg %p107
        $region22: #{tpu_custom_call.1} parent=11 // pred_check_branch
          %187 = sbr.rel (%p185) target = $region24
        $region23: #{tpu_custom_call.1} parent=11 // pred_region
          %s189 = ssub.s32 512, 512
          %190 = vsyncadd [#allocation6], %s189
          %s191 = sshll.u32 [#allocation7], 4
          %s192 = int_to_ptr.vmem [resolvable:$true] %s191
          %197 = dma.hbm_to_vmem [thread:$0]  %s3, 512, %s192, [#allocation6], 128, 128, 8
        $region24: #{tpu_custom_call.1} parent=11 // pred_fallthru
          _
        // Predicated region
        $region25: #{tpu_custom_call.1} parent=11 // pred_check
          %p198 = pneg %p128
        $region26: #{tpu_custom_call.1} parent=11 // pred_check_branch
          %200 = sbr.rel (%p198) target = $region28
        $region27: #{tpu_custom_call.1} parent=11 // pred_region
          _
        $region28: #{tpu_custom_call.1} parent=11 // pred_fallthru
          _
      $region12: #{tpu_custom_call.1} parent=5 // pred_fallthru
        _
      %p201 = scmp.lt.s32.totalorder %s18, 2
      // Predicated region
      $region29: #{tpu_custom_call.1} parent=5 // pred_check
        %p202 = pneg %p201
      $region30: #{tpu_custom_call.1} parent=5 // pred_check_branch
        %204 = sbr.rel (%p202) target = $region32
      $region31: #{tpu_custom_call.1} parent=5 // pred_region
        // Predicated region
        $region33: #{tpu_custom_call.1} parent=31 // pred_check
          %p205 = pneg %p38
        $region34: #{tpu_custom_call.1} parent=31 // pred_check_branch
          %207 = sbr.rel (%p205) target = $region36
        $region35: #{tpu_custom_call.1} parent=31 // pred_region
          %s208 = sand.u32 %s28, 1
          %s209 = scalar_lea.sflag [#allocation3], %s208
          %s210 = sand.u32 %s28, 1
          %s211 = smul.addr %s210, 8
          %s212 = scalar_lea.vmem [#allocation2], %s211
          %s214 = ssub.s32 128, 128
          %215 = vsyncadd %s209, %s214
          %s216 = smul.addr %s18, 128
          %s217 = scalar_lea.hbm %s0, %s216
          %s219 = sshll.u32 %s212, 4
          %s220 = int_to_ptr.vmem [resolvable:$true] %s219
          %222 = dma.hbm_to_vmem [thread:$0]  %s217, 128, %s220, %s209
        $region36: #{tpu_custom_call.1} parent=31 // pred_fallthru
          _
      $region32: #{tpu_custom_call.1} parent=5 // pred_fallthru
        _
      %p223 = scmp.le.s32.totalorder 1, %s18
      %p224 = scmp.lt.s32.totalorder %s18, 3
      %p225 = pnand %p223, %p224
      %p226 = pneg %p225
      // Predicated region
      $region37: #{tpu_custom_call.1} parent=5 // pred_check
        _
      $region38: #{tpu_custom_call.1} parent=5 // pred_check_branch
        %228 = sbr.rel (%p225) target = $region40
      $region39: #{tpu_custom_call.1} parent=5 // pred_region
        %s229 = ssub.s32 %s18, 1
        %s230 = sand.u32 %s31, 1
        %s231 = scalar_lea.sflag [#allocation3], %s230
        %s232 = sand.u32 %s31, 1
        %s233 = smul.addr %s232, 8
        %s234 = scalar_lea.vmem [#allocation2], %s233
        // Predicated region
        $region41: #{tpu_custom_call.1} parent=39 // pred_check
          %p235 = pneg %p44
        $region42: #{tpu_custom_call.1} parent=39 // pred_check_branch
          %237 = sbr.rel (%p235) target = $region44
        $region43: #{tpu_custom_call.1} parent=39 // pred_region
          %238 = dma.done %s231, 128
        $region44: #{tpu_custom_call.1} parent=39 // pred_fallthru
          _
        // Predicated region
        $region45: #{tpu_custom_call.1} parent=39 // pred_check
          %p239 = pneg %p65
        $region46: #{tpu_custom_call.1} parent=39 // pred_check_branch
          %241 = sbr.rel (%p239) target = $region48
        $region47: #{tpu_custom_call.1} parent=39 // pred_region
          %242 = dma.done [#allocation6], 512
        $region48: #{tpu_custom_call.1} parent=39 // pred_fallthru
          _
        // Predicated region
        $region49: #{tpu_custom_call.1} parent=39 // pred_check
          %p243 = pneg %p107
        $region50: #{tpu_custom_call.1} parent=39 // pred_check_branch
          %245 = sbr.rel (%p243) target = $region52
        $region51: #{tpu_custom_call.1} parent=39 // pred_region
          %246 = dma.done [#allocation6], 512
        $region52: #{tpu_custom_call.1} parent=39 // pred_fallthru
          _
        %s247 = sand.u32 %s31, 1
        %s248 = scalar_lea.sflag [#allocation3], %s247
        %s249 = sand.u32 %s31, 1
        %s250 = smul.addr %s249, 8
        %s251 = scalar_lea.vmem [#allocation2], %s250
        %p252 = pneg %p44
        %p253 = pneg %p41
        %p254 = pneg %p65
        %p255 = pneg %p62
        %p256 = pneg %p86
        %p257 = pneg %p83
        %p258 = pneg %p107
        %p259 = pneg %p104
        %p260 = pneg %p128
        %p261 = pneg %p125
        %p262 = pneg %p154
        %p263 = pneg %p151
        %s264 = sand.u32 %s141, 1
        %s265 = scalar_lea.sflag [#allocation4], %s264
        %s266 = sand.u32 %s141, 1
        %s267 = smul.addr %s266, 8
        %s268 = scalar_lea.vmem [#allocation8], %s267
        %v269 = vld [vmem:[%s234] sm:$0xff]
        %v270 = vld [vmem:[#allocation5] sm:$0xff]
        %v271 = vld [vmem:[#allocation5 + $0x8] sm:$0xff]
        %v272 = vld [vmem:[#allocation5 + $0x10] sm:$0xff]
        %v273 = vld [vmem:[#allocation5 + $0x18] sm:$0xff]
        %v274 = vld [vmem:[%s2] sm:$0x1]
        %v276 = vlaneseq
        %v277 = vshrl.u32 %v276, 7
        %v278 = vsub.s32 0, %v277
        %v279 = vrot.slane %v274, %v278
        %vm281 = vcmask 261120
        %v283 = vsel %vm281, %v269, 0
        %285 = vmatprep.subr.mxu0 0.0
        %286 = vmatpush1.msra.mxu0 %v270
        %287 = vmatprep.subr.mxu0 0.0
        %288 = vmatpush1.msra.mxu0 %v271
        %289 = vmatprep.subr.mxu0 0.0
        %290 = vmatpush1.msra.mxu0 %v272
        %291 = vmatprep.subr.mxu0 0.0
        %292 = vmatpush1.msra.mxu0 %v273
        %293 = vmatprep.subr.mxu0 0.0
        %294 = vmatpush1.msra.mxu0 0.0
        %295 = vmatprep.subr.mxu0 0.0
        %296 = vmatpush1.msra.mxu0 0.0
        %297 = vmatprep.subr.mxu0 0.0
        %298 = vmatpush1.msra.mxu0 0.0
        %299 = vmatprep.subr.mxu0 0.0
        %300 = vmatpush1.msra.mxu0 0.0
        %301 = vmatprep.subr.mxu0 0.0
        %302 = vmatpush1.msra.mxu0 0.0
        %303 = vmatprep.subr.mxu0 0.0
        %304 = vmatpush1.msra.mxu0 0.0
        %305 = vmatprep.subr.mxu0 0.0
        %306 = vmatpush1.msra.mxu0 0.0
        %307 = vmatprep.subr.mxu0 0.0
        %308 = vmatpush1.msra.mxu0 0.0
        %309 = vmatprep.subr.mxu0 0.0
        %310 = vmatpush1.msra.mxu0 0.0
        %311 = vmatprep.subr.mxu0 0.0
        %312 = vmatpush1.msra.mxu0 0.0
        %313 = vmatprep.subr.mxu0 0.0
        %314 = vmatpush1.msra.mxu0 0.0
        %315 = vmatprep.subr.mxu0 0.0
        %316 = vmatpush1.msra.mxu0 0.0
        %317 = vmatprep.subr.mxu0 0.0
        %318 = vmatpush1.msra.mxu0 0.0
        %319 = vmatprep.subr.mxu0 0.0
        %320 = vmatpush1.msra.mxu0 0.0
        %321 = vmatprep.subr.mxu0 0.0
        %322 = vmatpush1.msra.mxu0 0.0
        %323 = vmatprep.subr.mxu0 0.0
        %324 = vmatpush1.msra.mxu0 0.0
        %325 = vmatprep.subr.mxu0 0.0
        %326 = vmatpush1.msra.mxu0 0.0
        %327 = vmatprep.subr.mxu0 0.0
        %328 = vmatpush1.msra.mxu0 0.0
        %329 = vmatprep.subr.mxu0 0.0
        %330 = vmatpush1.msra.mxu0 0.0
        %331 = vmatprep.subr.mxu0 0.0
        %332 = vmatpush1.msra.mxu0 0.0
        %333 = vmatprep.subr.mxu0 0.0
        %334 = vmatpush1.msra.mxu0 0.0
        %335 = vmatprep.subr.mxu0 0.0
        %336 = vmatpush1.msra.mxu0 0.0
        %337 = vmatprep.subr.mxu0 0.0
        %338 = vmatpush1.msra.mxu0 0.0
        %339 = vmatprep.subr.mxu0 0.0
        %340 = vmatpush1.msra.mxu0 0.0
        %341 = vmatprep.subr.mxu0 0.0
        %342 = vmatpush1.msra.mxu0 0.0
        %343 = vmatprep.subr.mxu0 0.0
        %344 = vmatpush1.msra.mxu0 0.0
        %345 = vmatprep.subr.mxu0 0.0
        %346 = vmatpush1.msra.mxu0 0.0
        %347 = vmatprep.subr.mxu0 0.0
        %348 = vmatpush1.msra.mxu0 0.0
        %349 = vmatprep.mubr.f32.mxu0 0.0
        %350 = vmatmul.mubr.f32.gmra.mrb[0].mxu0 %v283
        %v351 = vpop.f32.mrb[0].mxu0
        %v352 = vadd.f32 %v279, %v351
        %v353 = vpop.f32.mrb[0].mxu0
        %354 = vdwg.mxu0
        %v355 = vmul.f32 %v352, 0.35355338
        %357 = vrot.lane.b32.xlu0 %v355, 120
        %v358 = vpop.permute.xlu0 %357
        %359 = vrot.lane.b32.xlu0 %v355, 112
        %v360 = vpop.permute.xlu0 %359
        %361 = vrot.lane.b32.xlu0 %v355, 104
        %v362 = vpop.permute.xlu0 %361
        %364 = vrot.lane.b32.xlu0 %v352, 120
        %v365 = vpop.permute.xlu0 %364
        %366 = vrot.lane.b32.xlu0 %v352, 112
        %v367 = vpop.permute.xlu0 %366
        %368 = vrot.lane.b32.xlu0 %v352, 104
        %v369 = vpop.permute.xlu0 %368
        %370 = vrot.lane.b32.xlu0 %v352, 96
        %v371 = vpop.permute.xlu0 %370
        %vm372 = vcmask 64512
        %v373 = vsel %vm372, %v355, 0
        %v375 = vsel %vm372, %v371, 0
        %377 = vmatprep.subr.mxu0 0.0
        %378 = vmatpush1.xpose.msra.mxu0 %v375
        %379 = vmatprep.subr.mxu0 0.0
        %380 = vmatpush1.xpose.msra.mxu0 0.0
        %381 = vmatprep.subr.mxu0 0.0
        %382 = vmatpush1.xpose.msra.mxu0 0.0
        %383 = vmatprep.subr.mxu0 0.0
        %384 = vmatpush1.xpose.msra.mxu0 0.0
        %385 = vmatprep.subr.mxu0 0.0
        %386 = vmatpush1.xpose.msra.mxu0 0.0
        %387 = vmatprep.subr.mxu0 0.0
        %388 = vmatpush1.xpose.msra.mxu0 0.0
        %389 = vmatprep.subr.mxu0 0.0
        %390 = vmatpush1.xpose.msra.mxu0 0.0
        %391 = vmatprep.subr.mxu0 0.0
        %392 = vmatpush1.xpose.msra.mxu0 0.0
        %393 = vmatprep.subr.mxu0 0.0
        %394 = vmatpush1.xpose.msra.mxu0 0.0
        %395 = vmatprep.subr.mxu0 0.0
        %396 = vmatpush1.xpose.msra.mxu0 0.0
        %397 = vmatprep.subr.mxu0 0.0
        %398 = vmatpush1.xpose.msra.mxu0 0.0
        %399 = vmatprep.subr.mxu0 0.0
        %400 = vmatpush1.xpose.msra.mxu0 0.0
        %401 = vmatprep.subr.mxu0 0.0
        %402 = vmatpush1.xpose.msra.mxu0 0.0
        %403 = vmatprep.subr.mxu0 0.0
        %404 = vmatpush1.xpose.msra.mxu0 0.0
        %405 = vmatprep.subr.mxu0 0.0
        %406 = vmatpush1.xpose.msra.mxu0 0.0
        %407 = vmatprep.subr.mxu0 0.0
        %408 = vmatpush1.xpose.msra.mxu0 0.0
        %409 = vmatprep.subr.mxu0 0.0
        %410 = vmatpush1.xpose.msra.mxu0 0.0
        %411 = vmatprep.subr.mxu0 0.0
        %412 = vmatpush1.xpose.msra.mxu0 0.0
        %413 = vmatprep.subr.mxu0 0.0
        %414 = vmatpush1.xpose.msra.mxu0 0.0
        %415 = vmatprep.subr.mxu0 0.0
        %416 = vmatpush1.xpose.msra.mxu0 0.0
        %417 = vmatprep.subr.mxu0 0.0
        %418 = vmatpush1.xpose.msra.mxu0 0.0
        %419 = vmatprep.subr.mxu0 0.0
        %420 = vmatpush1.xpose.msra.mxu0 0.0
        %421 = vmatprep.subr.mxu0 0.0
        %422 = vmatpush1.xpose.msra.mxu0 0.0
        %423 = vmatprep.subr.mxu0 0.0
        %424 = vmatpush1.xpose.msra.mxu0 0.0
        %425 = vmatprep.subr.mxu0 0.0
        %426 = vmatpush1.xpose.msra.mxu0 0.0
        %427 = vmatprep.subr.mxu0 0.0
        %428 = vmatpush1.xpose.msra.mxu0 0.0
        %429 = vmatprep.subr.mxu0 0.0
        %430 = vmatpush1.xpose.msra.mxu0 0.0
        %431 = vmatprep.subr.mxu0 0.0
        %432 = vmatpush1.xpose.msra.mxu0 0.0
        %433 = vmatprep.subr.mxu0 0.0
        %434 = vmatpush1.xpose.msra.mxu0 0.0
        %435 = vmatprep.subr.mxu0 0.0
        %436 = vmatpush1.xpose.msra.mxu0 0.0
        %437 = vmatprep.subr.mxu0 0.0
        %438 = vmatpush1.xpose.msra.mxu0 0.0
        %439 = vmatprep.subr.mxu0 0.0
        %440 = vmatpush1.xpose.msra.mxu0 0.0
        %441 = vmatprep.mubr.f32.mxu0 0.0
        %442 = vmatmul.mubr.f32.gmra.mrb[0].mxu0 %v373
        %v443 = vpop.f32.mrb[0].mxu0
        %v444 = vadd.f32 0.0, %v443
        %v445 = vpop.f32.mrb[0].mxu0
        %446 = vdwg.mxu0
        %447 = vrot.lane.b32.xlu0 %v365, 96
        %v448 = vpop.permute.xlu0 %447
        %v449 = vsel %vm372, %v358, 0
        %v451 = vsel %vm372, %v448, 0
        %453 = vmatprep.subr.mxu0 0.0
        %454 = vmatpush1.xpose.msra.mxu0 %v451
        %455 = vmatprep.subr.mxu0 0.0
        %456 = vmatpush1.xpose.msra.mxu0 0.0
        %457 = vmatprep.subr.mxu0 0.0
        %458 = vmatpush1.xpose.msra.mxu0 0.0
        %459 = vmatprep.subr.mxu0 0.0
        %460 = vmatpush1.xpose.msra.mxu0 0.0
        %461 = vmatprep.subr.mxu0 0.0
        %462 = vmatpush1.xpose.msra.mxu0 0.0
        %463 = vmatprep.subr.mxu0 0.0
        %464 = vmatpush1.xpose.msra.mxu0 0.0
        %465 = vmatprep.subr.mxu0 0.0
        %466 = vmatpush1.xpose.msra.mxu0 0.0
        %467 = vmatprep.subr.mxu0 0.0
        %468 = vmatpush1.xpose.msra.mxu0 0.0
        %469 = vmatprep.subr.mxu0 0.0
        %470 = vmatpush1.xpose.msra.mxu0 0.0
        %471 = vmatprep.subr.mxu0 0.0
        %472 = vmatpush1.xpose.msra.mxu0 0.0
        %473 = vmatprep.subr.mxu0 0.0
        %474 = vmatpush1.xpose.msra.mxu0 0.0
        %475 = vmatprep.subr.mxu0 0.0
        %476 = vmatpush1.xpose.msra.mxu0 0.0
        %477 = vmatprep.subr.mxu0 0.0
        %478 = vmatpush1.xpose.msra.mxu0 0.0
        %479 = vmatprep.subr.mxu0 0.0
        %480 = vmatpush1.xpose.msra.mxu0 0.0
        %481 = vmatprep.subr.mxu0 0.0
        %482 = vmatpush1.xpose.msra.mxu0 0.0
        %483 = vmatprep.subr.mxu0 0.0
        %484 = vmatpush1.xpose.msra.mxu0 0.0
        %485 = vmatprep.subr.mxu0 0.0
        %486 = vmatpush1.xpose.msra.mxu0 0.0
        %487 = vmatprep.subr.mxu0 0.0
        %488 = vmatpush1.xpose.msra.mxu0 0.0
        %489 = vmatprep.subr.mxu0 0.0
        %490 = vmatpush1.xpose.msra.mxu0 0.0
        %491 = vmatprep.subr.mxu0 0.0
        %492 = vmatpush1.xpose.msra.mxu0 0.0
        %493 = vmatprep.subr.mxu0 0.0
        %494 = vmatpush1.xpose.msra.mxu0 0.0
        %495 = vmatprep.subr.mxu0 0.0
        %496 = vmatpush1.xpose.msra.mxu0 0.0
        %497 = vmatprep.subr.mxu0 0.0
        %498 = vmatpush1.xpose.msra.mxu0 0.0
        %499 = vmatprep.subr.mxu0 0.0
        %500 = vmatpush1.xpose.msra.mxu0 0.0
        %501 = vmatprep.subr.mxu0 0.0
        %502 = vmatpush1.xpose.msra.mxu0 0.0
        %503 = vmatprep.subr.mxu0 0.0
        %504 = vmatpush1.xpose.msra.mxu0 0.0
        %505 = vmatprep.subr.mxu0 0.0
        %506 = vmatpush1.xpose.msra.mxu0 0.0
        %507 = vmatprep.subr.mxu0 0.0
        %508 = vmatpush1.xpose.msra.mxu0 0.0
        %509 = vmatprep.subr.mxu0 0.0
        %510 = vmatpush1.xpose.msra.mxu0 0.0
        %511 = vmatprep.subr.mxu0 0.0
        %512 = vmatpush1.xpose.msra.mxu0 0.0
        %513 = vmatprep.subr.mxu0 0.0
        %514 = vmatpush1.xpose.msra.mxu0 0.0
        %515 = vmatprep.subr.mxu0 0.0
        %516 = vmatpush1.xpose.msra.mxu0 0.0
        %517 = vmatprep.mubr.f32.mxu0 0.0
        %518 = vmatmul.mubr.f32.gmra.mrb[0].mxu0 %v449
        %v519 = vpop.f32.mrb[0].mxu0
        %v520 = vadd.f32 0.0, %v519
        %v521 = vpop.f32.mrb[0].mxu0
        %522 = vdwg.mxu0
        %523 = vrot.lane.b32.xlu0 %v367, 96
        %v524 = vpop.permute.xlu0 %523
        %v525 = vsel %vm372, %v360, 0
        %v527 = vsel %vm372, %v524, 0
        %529 = vmatprep.subr.mxu0 0.0
        %530 = vmatpush1.xpose.msra.mxu0 %v527
        %531 = vmatprep.subr.mxu0 0.0
        %532 = vmatpush1.xpose.msra.mxu0 0.0
        %533 = vmatprep.subr.mxu0 0.0
        %534 = vmatpush1.xpose.msra.mxu0 0.0
        %535 = vmatprep.subr.mxu0 0.0
        %536 = vmatpush1.xpose.msra.mxu0 0.0
        %537 = vmatprep.subr.mxu0 0.0
        %538 = vmatpush1.xpose.msra.mxu0 0.0
        %539 = vmatprep.subr.mxu0 0.0
        %540 = vmatpush1.xpose.msra.mxu0 0.0
        %541 = vmatprep.subr.mxu0 0.0
        %542 = vmatpush1.xpose.msra.mxu0 0.0
        %543 = vmatprep.subr.mxu0 0.0
        %544 = vmatpush1.xpose.msra.mxu0 0.0
        %545 = vmatprep.subr.mxu0 0.0
        %546 = vmatpush1.xpose.msra.mxu0 0.0
        %547 = vmatprep.subr.mxu0 0.0
        %548 = vmatpush1.xpose.msra.mxu0 0.0
        %549 = vmatprep.subr.mxu0 0.0
        %550 = vmatpush1.xpose.msra.mxu0 0.0
        %551 = vmatprep.subr.mxu0 0.0
        %552 = vmatpush1.xpose.msra.mxu0 0.0
        %553 = vmatprep.subr.mxu0 0.0
        %554 = vmatpush1.xpose.msra.mxu0 0.0
        %555 = vmatprep.subr.mxu0 0.0
        %556 = vmatpush1.xpose.msra.mxu0 0.0
        %557 = vmatprep.subr.mxu0 0.0
        %558 = vmatpush1.xpose.msra.mxu0 0.0
        %559 = vmatprep.subr.mxu0 0.0
        %560 = vmatpush1.xpose.msra.mxu0 0.0
        %561 = vmatprep.subr.mxu0 0.0
        %562 = vmatpush1.xpose.msra.mxu0 0.0
        %563 = vmatprep.subr.mxu0 0.0
        %564 = vmatpush1.xpose.msra.mxu0 0.0
        %565 = vmatprep.subr.mxu0 0.0
        %566 = vmatpush1.xpose.msra.mxu0 0.0
        %567 = vmatprep.subr.mxu0 0.0
        %568 = vmatpush1.xpose.msra.mxu0 0.0
        %569 = vmatprep.subr.mxu0 0.0
        %570 = vmatpush1.xpose.msra.mxu0 0.0
        %571 = vmatprep.subr.mxu0 0.0
        %572 = vmatpush1.xpose.msra.mxu0 0.0
        %573 = vmatprep.subr.mxu0 0.0
        %574 = vmatpush1.xpose.msra.mxu0 0.0
        %575 = vmatprep.subr.mxu0 0.0
        %576 = vmatpush1.xpose.msra.mxu0 0.0
        %577 = vmatprep.subr.mxu0 0.0
        %578 = vmatpush1.xpose.msra.mxu0 0.0
        %579 = vmatprep.subr.mxu0 0.0
        %580 = vmatpush1.xpose.msra.mxu0 0.0
        %581 = vmatprep.subr.mxu0 0.0
        %582 = vmatpush1.xpose.msra.mxu0 0.0
        %583 = vmatprep.subr.mxu0 0.0
        %584 = vmatpush1.xpose.msra.mxu0 0.0
        %585 = vmatprep.subr.mxu0 0.0
        %586 = vmatpush1.xpose.msra.mxu0 0.0
        %587 = vmatprep.subr.mxu0 0.0
        %588 = vmatpush1.xpose.msra.mxu0 0.0
        %589 = vmatprep.subr.mxu0 0.0
        %590 = vmatpush1.xpose.msra.mxu0 0.0
        %591 = vmatprep.subr.mxu0 0.0
        %592 = vmatpush1.xpose.msra.mxu0 0.0
        %593 = vmatprep.mubr.f32.mxu0 0.0
        %594 = vmatmul.mubr.f32.gmra.mrb[0].mxu0 %v525
        %v595 = vpop.f32.mrb[0].mxu0
        %v596 = vadd.f32 0.0, %v595
        %v597 = vpop.f32.mrb[0].mxu0
        %598 = vdwg.mxu0
        %599 = vrot.lane.b32.xlu0 %v369, 96
        %v600 = vpop.permute.xlu0 %599
        %v601 = vsel %vm372, %v362, 0
        %v603 = vsel %vm372, %v600, 0
        %605 = vmatprep.subr.mxu0 0.0
        %606 = vmatpush1.xpose.msra.mxu0 %v603
        %607 = vmatprep.subr.mxu0 0.0
        %608 = vmatpush1.xpose.msra.mxu0 0.0
        %609 = vmatprep.subr.mxu0 0.0
        %610 = vmatpush1.xpose.msra.mxu0 0.0
        %611 = vmatprep.subr.mxu0 0.0
        %612 = vmatpush1.xpose.msra.mxu0 0.0
        %613 = vmatprep.subr.mxu0 0.0
        %614 = vmatpush1.xpose.msra.mxu0 0.0
        %615 = vmatprep.subr.mxu0 0.0
        %616 = vmatpush1.xpose.msra.mxu0 0.0
        %617 = vmatprep.subr.mxu0 0.0
        %618 = vmatpush1.xpose.msra.mxu0 0.0
        %619 = vmatprep.subr.mxu0 0.0
        %620 = vmatpush1.xpose.msra.mxu0 0.0
        %621 = vmatprep.subr.mxu0 0.0
        %622 = vmatpush1.xpose.msra.mxu0 0.0
        %623 = vmatprep.subr.mxu0 0.0
        %624 = vmatpush1.xpose.msra.mxu0 0.0
        %625 = vmatprep.subr.mxu0 0.0
        %626 = vmatpush1.xpose.msra.mxu0 0.0
        %627 = vmatprep.subr.mxu0 0.0
        %628 = vmatpush1.xpose.msra.mxu0 0.0
        %629 = vmatprep.subr.mxu0 0.0
        %630 = vmatpush1.xpose.msra.mxu0 0.0
        %631 = vmatprep.subr.mxu0 0.0
        %632 = vmatpush1.xpose.msra.mxu0 0.0
        %633 = vmatprep.subr.mxu0 0.0
        %634 = vmatpush1.xpose.msra.mxu0 0.0
        %635 = vmatprep.subr.mxu0 0.0
        %636 = vmatpush1.xpose.msra.mxu0 0.0
        %637 = vmatprep.subr.mxu0 0.0
        %638 = vmatpush1.xpose.msra.mxu0 0.0
        %639 = vmatprep.subr.mxu0 0.0
        %640 = vmatpush1.xpose.msra.mxu0 0.0
        %641 = vmatprep.subr.mxu0 0.0
        %642 = vmatpush1.xpose.msra.mxu0 0.0
        %643 = vmatprep.subr.mxu0 0.0
        %644 = vmatpush1.xpose.msra.mxu0 0.0
        %645 = vmatprep.subr.mxu0 0.0
        %646 = vmatpush1.xpose.msra.mxu0 0.0
        %647 = vmatprep.subr.mxu0 0.0
        %648 = vmatpush1.xpose.msra.mxu0 0.0
        %649 = vmatprep.subr.mxu0 0.0
        %650 = vmatpush1.xpose.msra.mxu0 0.0
        %651 = vmatprep.subr.mxu0 0.0
        %652 = vmatpush1.xpose.msra.mxu0 0.0
        %653 = vmatprep.subr.mxu0 0.0
        %654 = vmatpush1.xpose.msra.mxu0 0.0
        %655 = vmatprep.subr.mxu0 0.0
        %656 = vmatpush1.xpose.msra.mxu0 0.0
        %657 = vmatprep.subr.mxu0 0.0
        %658 = vmatpush1.xpose.msra.mxu0 0.0
        %659 = vmatprep.subr.mxu0 0.0
        %660 = vmatpush1.xpose.msra.mxu0 0.0
        %661 = vmatprep.subr.mxu0 0.0
        %662 = vmatpush1.xpose.msra.mxu0 0.0
        %663 = vmatprep.subr.mxu0 0.0
        %664 = vmatpush1.xpose.msra.mxu0 0.0
        %665 = vmatprep.subr.mxu0 0.0
        %666 = vmatpush1.xpose.msra.mxu0 0.0
        %667 = vmatprep.subr.mxu0 0.0
        %668 = vmatpush1.xpose.msra.mxu0 0.0
        %669 = vmatprep.mubr.f32.mxu0 0.0
        %670 = vmatmul.mubr.f32.gmra.mrb[0].mxu0 %v601
        %v671 = vpop.f32.mrb[0].mxu0
        %v672 = vadd.f32 0.0, %v671
        %v673 = vpop.f32.mrb[0].mxu0
        %674 = vdwg.mxu0
        %v675 = vsel %vm372, %v444, -inf
        %676 = vmax.xlane.f32.xlu0 %v675
        %v677 = vpop.xlane.xlu0 %676
        %v678 = vsel %vm372, %v520, -inf
        %679 = vmax.xlane.f32.xlu0 %v678
        %v680 = vpop.xlane.xlu0 %679
        %v681 = vsel %vm372, %v596, -inf
        %682 = vmax.xlane.f32.xlu0 %v681
        %v683 = vpop.xlane.xlu0 %682
        %v684 = vsel %vm372, %v672, -inf
        %685 = vmax.xlane.f32.xlu0 %v684
        %v686 = vpop.xlane.xlu0 %685
        %v687 = vsub.f32 %v444, %v677
        %v688 = vsub.f32 %v520, %v680
        %v689 = vsub.f32 %v596, %v683
        %v690 = vsub.f32 %v672, %v686
        %v691 = vmul.f32 %v687, 1.442695
        %v692 = vpow.pop %v691
        %v693 = vmul.f32 %v688, 1.442695
        %v694 = vpow.pop %v693
        %v695 = vmul.f32 %v689, 1.442695
        %v696 = vpow.pop %v695
        %v697 = vmul.f32 %v690, 1.442695
        %v698 = vpow.pop %v697
        %v699 = vsel %vm372, %v692, 0.0
        %700 = vadd.xlane.f32.xlu0 %v699
        %v701 = vpop.xlane.xlu0 %700
        %v702 = vsel %vm372, %v694, 0.0
        %703 = vadd.xlane.f32.xlu0 %v702
        %v704 = vpop.xlane.xlu0 %703
        %v705 = vsel %vm372, %v696, 0.0
        %706 = vadd.xlane.f32.xlu0 %v705
        %v707 = vpop.xlane.xlu0 %706
        %v708 = vsel %vm372, %v698, 0.0
        %709 = vadd.xlane.f32.xlu0 %v708
        %v710 = vpop.xlane.xlu0 %709
        %v711 = vrcp.pop %v701
        %v712 = vrcp.pop %v704
        %v713 = vrcp.pop %v707
        %v714 = vrcp.pop %v710
        %v715 = vmul.f32 %v692, %v711
        %v716 = vmul.f32 %v694, %v712
        %v717 = vmul.f32 %v696, %v713
        %v718 = vmul.f32 %v698, %v714
        %719 = vrot.lane.b32.xlu0 %v352, 64
        %v720 = vpop.permute.xlu0 %719
        %v723 = vsel %vm372, %v715, 0
        %725 = vmatprep.subr.mxu0 0.0
        %726 = vmatpush1.msra.mxu0 %v720
        %727 = vmatprep.subr.mxu0 0.0
        %728 = vmatpush1.msra.mxu0 0.0
        %729 = vmatprep.subr.mxu0 0.0
        %730 = vmatpush1.msra.mxu0 0.0
        %731 = vmatprep.subr.mxu0 0.0
        %732 = vmatpush1.msra.mxu0 0.0
        %733 = vmatprep.subr.mxu0 0.0
        %734 = vmatpush1.msra.mxu0 0.0
        %735 = vmatprep.subr.mxu0 0.0
        %736 = vmatpush1.msra.mxu0 0.0
        %737 = vmatprep.subr.mxu0 0.0
        %738 = vmatpush1.msra.mxu0 0.0
        %739 = vmatprep.subr.mxu0 0.0
        %740 = vmatpush1.msra.mxu0 0.0
        %741 = vmatprep.subr.mxu0 0.0
        %742 = vmatpush1.msra.mxu0 0.0
        %743 = vmatprep.subr.mxu0 0.0
        %744 = vmatpush1.msra.mxu0 0.0
        %745 = vmatprep.subr.mxu0 0.0
        %746 = vmatpush1.msra.mxu0 0.0
        %747 = vmatprep.subr.mxu0 0.0
        %748 = vmatpush1.msra.mxu0 0.0
        %749 = vmatprep.subr.mxu0 0.0
        %750 = vmatpush1.msra.mxu0 0.0
        %751 = vmatprep.subr.mxu0 0.0
        %752 = vmatpush1.msra.mxu0 0.0
        %753 = vmatprep.subr.mxu0 0.0
        %754 = vmatpush1.msra.mxu0 0.0
        %755 = vmatprep.subr.mxu0 0.0
        %756 = vmatpush1.msra.mxu0 0.0
        %757 = vmatprep.subr.mxu0 0.0
        %758 = vmatpush1.msra.mxu0 0.0
        %759 = vmatprep.subr.mxu0 0.0
        %760 = vmatpush1.msra.mxu0 0.0
        %761 = vmatprep.subr.mxu0 0.0
        %762 = vmatpush1.msra.mxu0 0.0
        %763 = vmatprep.subr.mxu0 0.0
        %764 = vmatpush1.msra.mxu0 0.0
        %765 = vmatprep.subr.mxu0 0.0
        %766 = vmatpush1.msra.mxu0 0.0
        %767 = vmatprep.subr.mxu0 0.0
        %768 = vmatpush1.msra.mxu0 0.0
        %769 = vmatprep.subr.mxu0 0.0
        %770 = vmatpush1.msra.mxu0 0.0
        %771 = vmatprep.subr.mxu0 0.0
        %772 = vmatpush1.msra.mxu0 0.0
        %773 = vmatprep.subr.mxu0 0.0
        %774 = vmatpush1.msra.mxu0 0.0
        %775 = vmatprep.subr.mxu0 0.0
        %776 = vmatpush1.msra.mxu0 0.0
        %777 = vmatprep.subr.mxu0 0.0
        %778 = vmatpush1.msra.mxu0 0.0
        %779 = vmatprep.subr.mxu0 0.0
        %780 = vmatpush1.msra.mxu0 0.0
        %781 = vmatprep.subr.mxu0 0.0
        %782 = vmatpush1.msra.mxu0 0.0
        %783 = vmatprep.subr.mxu0 0.0
        %784 = vmatpush1.msra.mxu0 0.0
        %785 = vmatprep.subr.mxu0 0.0
        %786 = vmatpush1.msra.mxu0 0.0
        %787 = vmatprep.subr.mxu0 0.0
        %788 = vmatpush1.msra.mxu0 0.0
        %789 = vmatprep.mubr.f32.mxu0 0.0
        %790 = vmatmul.mubr.f32.gmra.mrb[0].mxu0 %v723
        %v791 = vpop.f32.mrb[0].mxu0
        %v792 = vadd.f32 0.0, %v791
        %v793 = vpop.f32.mrb[0].mxu0
        %794 = vdwg.mxu0
        %795 = vrot.lane.b32.xlu0 %v365, 64
        %v796 = vpop.permute.xlu0 %795
        %v799 = vsel %vm372, %v716, 0
        %801 = vmatprep.subr.mxu0 0.0
        %802 = vmatpush1.msra.mxu0 %v796
        %803 = vmatprep.subr.mxu0 0.0
        %804 = vmatpush1.msra.mxu0 0.0
        %805 = vmatprep.subr.mxu0 0.0
        %806 = vmatpush1.msra.mxu0 0.0
        %807 = vmatprep.subr.mxu0 0.0
        %808 = vmatpush1.msra.mxu0 0.0
        %809 = vmatprep.subr.mxu0 0.0
        %810 = vmatpush1.msra.mxu0 0.0
        %811 = vmatprep.subr.mxu0 0.0
        %812 = vmatpush1.msra.mxu0 0.0
        %813 = vmatprep.subr.mxu0 0.0
        %814 = vmatpush1.msra.mxu0 0.0
        %815 = vmatprep.subr.mxu0 0.0
        %816 = vmatpush1.msra.mxu0 0.0
        %817 = vmatprep.subr.mxu0 0.0
        %818 = vmatpush1.msra.mxu0 0.0
        %819 = vmatprep.subr.mxu0 0.0
        %820 = vmatpush1.msra.mxu0 0.0
        %821 = vmatprep.subr.mxu0 0.0
        %822 = vmatpush1.msra.mxu0 0.0
        %823 = vmatprep.subr.mxu0 0.0
        %824 = vmatpush1.msra.mxu0 0.0
        %825 = vmatprep.subr.mxu0 0.0
        %826 = vmatpush1.msra.mxu0 0.0
        %827 = vmatprep.subr.mxu0 0.0
        %828 = vmatpush1.msra.mxu0 0.0
        %829 = vmatprep.subr.mxu0 0.0
        %830 = vmatpush1.msra.mxu0 0.0
        %831 = vmatprep.subr.mxu0 0.0
        %832 = vmatpush1.msra.mxu0 0.0
        %833 = vmatprep.subr.mxu0 0.0
        %834 = vmatpush1.msra.mxu0 0.0
        %835 = vmatprep.subr.mxu0 0.0
        %836 = vmatpush1.msra.mxu0 0.0
        %837 = vmatprep.subr.mxu0 0.0
        %838 = vmatpush1.msra.mxu0 0.0
        %839 = vmatprep.subr.mxu0 0.0
        %840 = vmatpush1.msra.mxu0 0.0
        %841 = vmatprep.subr.mxu0 0.0
        %842 = vmatpush1.msra.mxu0 0.0
        %843 = vmatprep.subr.mxu0 0.0
        %844 = vmatpush1.msra.mxu0 0.0
        %845 = vmatprep.subr.mxu0 0.0
        %846 = vmatpush1.msra.mxu0 0.0
        %847 = vmatprep.subr.mxu0 0.0
        %848 = vmatpush1.msra.mxu0 0.0
        %849 = vmatprep.subr.mxu0 0.0
        %850 = vmatpush1.msra.mxu0 0.0
        %851 = vmatprep.subr.mxu0 0.0
        %852 = vmatpush1.msra.mxu0 0.0
        %853 = vmatprep.subr.mxu0 0.0
        %854 = vmatpush1.msra.mxu0 0.0
        %855 = vmatprep.subr.mxu0 0.0
        %856 = vmatpush1.msra.mxu0 0.0
        %857 = vmatprep.subr.mxu0 0.0
        %858 = vmatpush1.msra.mxu0 0.0
        %859 = vmatprep.subr.mxu0 0.0
        %860 = vmatpush1.msra.mxu0 0.0
        %861 = vmatprep.subr.mxu0 0.0
        %862 = vmatpush1.msra.mxu0 0.0
        %863 = vmatprep.subr.mxu0 0.0
        %864 = vmatpush1.msra.mxu0 0.0
        %865 = vmatprep.mubr.f32.mxu0 0.0
        %866 = vmatmul.mubr.f32.gmra.mrb[0].mxu0 %v799
        %v867 = vpop.f32.mrb[0].mxu0
        %v868 = vadd.f32 0.0, %v867
        %v869 = vpop.f32.mrb[0].mxu0
        %870 = vdwg.mxu0
        %871 = vrot.lane.b32.xlu0 %v367, 64
        %v872 = vpop.permute.xlu0 %871
        %v875 = vsel %vm372, %v717, 0
        %877 = vmatprep.subr.mxu0 0.0
        %878 = vmatpush1.msra.mxu0 %v872
        %879 = vmatprep.subr.mxu0 0.0
        %880 = vmatpush1.msra.mxu0 0.0
        %881 = vmatprep.subr.mxu0 0.0
        %882 = vmatpush1.msra.mxu0 0.0
        %883 = vmatprep.subr.mxu0 0.0
        %884 = vmatpush1.msra.mxu0 0.0
        %885 = vmatprep.subr.mxu0 0.0
        %886 = vmatpush1.msra.mxu0 0.0
        %887 = vmatprep.subr.mxu0 0.0
        %888 = vmatpush1.msra.mxu0 0.0
        %889 = vmatprep.subr.mxu0 0.0
        %890 = vmatpush1.msra.mxu0 0.0
        %891 = vmatprep.subr.mxu0 0.0
        %892 = vmatpush1.msra.mxu0 0.0
        %893 = vmatprep.subr.mxu0 0.0
        %894 = vmatpush1.msra.mxu0 0.0
        %895 = vmatprep.subr.mxu0 0.0
        %896 = vmatpush1.msra.mxu0 0.0
        %897 = vmatprep.subr.mxu0 0.0
        %898 = vmatpush1.msra.mxu0 0.0
        %899 = vmatprep.subr.mxu0 0.0
        %900 = vmatpush1.msra.mxu0 0.0
        %901 = vmatprep.subr.mxu0 0.0
        %902 = vmatpush1.msra.mxu0 0.0
        %903 = vmatprep.subr.mxu0 0.0
        %904 = vmatpush1.msra.mxu0 0.0
        %905 = vmatprep.subr.mxu0 0.0
        %906 = vmatpush1.msra.mxu0 0.0
        %907 = vmatprep.subr.mxu0 0.0
        %908 = vmatpush1.msra.mxu0 0.0
        %909 = vmatprep.subr.mxu0 0.0
        %910 = vmatpush1.msra.mxu0 0.0
        %911 = vmatprep.subr.mxu0 0.0
        %912 = vmatpush1.msra.mxu0 0.0
        %913 = vmatprep.subr.mxu0 0.0
        %914 = vmatpush1.msra.mxu0 0.0
        %915 = vmatprep.subr.mxu0 0.0
        %916 = vmatpush1.msra.mxu0 0.0
        %917 = vmatprep.subr.mxu0 0.0
        %918 = vmatpush1.msra.mxu0 0.0
        %919 = vmatprep.subr.mxu0 0.0
        %920 = vmatpush1.msra.mxu0 0.0
        %921 = vmatprep.subr.mxu0 0.0
        %922 = vmatpush1.msra.mxu0 0.0
        %923 = vmatprep.subr.mxu0 0.0
        %924 = vmatpush1.msra.mxu0 0.0
        %925 = vmatprep.subr.mxu0 0.0
        %926 = vmatpush1.msra.mxu0 0.0
        %927 = vmatprep.subr.mxu0 0.0
        %928 = vmatpush1.msra.mxu0 0.0
        %929 = vmatprep.subr.mxu0 0.0
        %930 = vmatpush1.msra.mxu0 0.0
        %931 = vmatprep.subr.mxu0 0.0
        %932 = vmatpush1.msra.mxu0 0.0
        %933 = vmatprep.subr.mxu0 0.0
        %934 = vmatpush1.msra.mxu0 0.0
        %935 = vmatprep.subr.mxu0 0.0
        %936 = vmatpush1.msra.mxu0 0.0
        %937 = vmatprep.subr.mxu0 0.0
        %938 = vmatpush1.msra.mxu0 0.0
        %939 = vmatprep.subr.mxu0 0.0
        %940 = vmatpush1.msra.mxu0 0.0
        %941 = vmatprep.mubr.f32.mxu0 0.0
        %942 = vmatmul.mubr.f32.gmra.mrb[0].mxu0 %v875
        %v943 = vpop.f32.mrb[0].mxu0
        %v944 = vadd.f32 0.0, %v943
        %v945 = vpop.f32.mrb[0].mxu0
        %946 = vdwg.mxu0
        %947 = vrot.lane.b32.xlu0 %v369, 64
        %v948 = vpop.permute.xlu0 %947
        %v951 = vsel %vm372, %v718, 0
        %953 = vmatprep.subr.mxu0 0.0
        %954 = vmatpush1.msra.mxu0 %v948
        %955 = vmatprep.subr.mxu0 0.0
        %956 = vmatpush1.msra.mxu0 0.0
        %957 = vmatprep.subr.mxu0 0.0
        %958 = vmatpush1.msra.mxu0 0.0
        %959 = vmatprep.subr.mxu0 0.0
        %960 = vmatpush1.msra.mxu0 0.0
        %961 = vmatprep.subr.mxu0 0.0
        %962 = vmatpush1.msra.mxu0 0.0
        %963 = vmatprep.subr.mxu0 0.0
        %964 = vmatpush1.msra.mxu0 0.0
        %965 = vmatprep.subr.mxu0 0.0
        %966 = vmatpush1.msra.mxu0 0.0
        %967 = vmatprep.subr.mxu0 0.0
        %968 = vmatpush1.msra.mxu0 0.0
        %969 = vmatprep.subr.mxu0 0.0
        %970 = vmatpush1.msra.mxu0 0.0
        %971 = vmatprep.subr.mxu0 0.0
        %972 = vmatpush1.msra.mxu0 0.0
        %973 = vmatprep.subr.mxu0 0.0
        %974 = vmatpush1.msra.mxu0 0.0
        %975 = vmatprep.subr.mxu0 0.0
        %976 = vmatpush1.msra.mxu0 0.0
        %977 = vmatprep.subr.mxu0 0.0
        %978 = vmatpush1.msra.mxu0 0.0
        %979 = vmatprep.subr.mxu0 0.0
        %980 = vmatpush1.msra.mxu0 0.0
        %981 = vmatprep.subr.mxu0 0.0
        %982 = vmatpush1.msra.mxu0 0.0
        %983 = vmatprep.subr.mxu0 0.0
        %984 = vmatpush1.msra.mxu0 0.0
        %985 = vmatprep.subr.mxu0 0.0
        %986 = vmatpush1.msra.mxu0 0.0
        %987 = vmatprep.subr.mxu0 0.0
        %988 = vmatpush1.msra.mxu0 0.0
        %989 = vmatprep.subr.mxu0 0.0
        %990 = vmatpush1.msra.mxu0 0.0
        %991 = vmatprep.subr.mxu0 0.0
        %992 = vmatpush1.msra.mxu0 0.0
        %993 = vmatprep.subr.mxu0 0.0
        %994 = vmatpush1.msra.mxu0 0.0
        %995 = vmatprep.subr.mxu0 0.0
        %996 = vmatpush1.msra.mxu0 0.0
        %997 = vmatprep.subr.mxu0 0.0
        %998 = vmatpush1.msra.mxu0 0.0
        %999 = vmatprep.subr.mxu0 0.0
        %1000 = vmatpush1.msra.mxu0 0.0
        %1001 = vmatprep.subr.mxu0 0.0
        %1002 = vmatpush1.msra.mxu0 0.0
        %1003 = vmatprep.subr.mxu0 0.0
        %1004 = vmatpush1.msra.mxu0 0.0
        %1005 = vmatprep.subr.mxu0 0.0
        %1006 = vmatpush1.msra.mxu0 0.0
        %1007 = vmatprep.subr.mxu0 0.0
        %1008 = vmatpush1.msra.mxu0 0.0
        %1009 = vmatprep.subr.mxu0 0.0
        %1010 = vmatpush1.msra.mxu0 0.0
        %1011 = vmatprep.subr.mxu0 0.0
        %1012 = vmatpush1.msra.mxu0 0.0
        %1013 = vmatprep.subr.mxu0 0.0
        %1014 = vmatpush1.msra.mxu0 0.0
        %1015 = vmatprep.subr.mxu0 0.0
        %1016 = vmatpush1.msra.mxu0 0.0
        %1017 = vmatprep.mubr.f32.mxu0 0.0
        %1018 = vmatmul.mubr.f32.gmra.mrb[0].mxu0 %v951
        %v1019 = vpop.f32.mrb[0].mxu0
        %v1020 = vadd.f32 0.0, %v1019
        %v1021 = vpop.f32.mrb[0].mxu0
        %1022 = vdwg.mxu0
        %1024 = vrot.lane.b32.xlu0 %v868, 8
        %v1025 = vpop.permute.xlu0 %1024
        %1028 = vrot.lane.b32.xlu0 %v944, 16
        %v1029 = vpop.permute.xlu0 %1028
        %1032 = vrot.lane.b32.xlu0 %v1020, 24
        %v1033 = vpop.permute.xlu0 %1032
        %v1035 = vsel %vm372, %v792, %v1025
        %vm1036 = vcmask 130048
        %v1037 = vsel %vm1036, %v1035, %v1029
        %vm1038 = vcmask 195584
        %v1039 = vsel %vm1038, %v1037, %v1033
        %v1040 = vld [vmem:[#allocation7] sm:$0xff]
        %v1041 = vld [vmem:[#allocation7 + $0x8] sm:$0xff]
        %v1042 = vld [vmem:[#allocation7 + $0x10] sm:$0xff]
        %v1043 = vld [vmem:[#allocation7 + $0x18] sm:$0xff]
        %v1044 = vld [vmem:[%s4] sm:$0x1]
        %v1046 = vlaneseq
        %v1047 = vshrl.u32 %v1046, 7
        %v1048 = vsub.s32 0, %v1047
        %v1049 = vrot.slane %v1044, %v1048
        %v1052 = vsel %vm281, %v1039, 0
        %1054 = vmatprep.subr.mxu0 0.0
        %1055 = vmatpush1.msra.mxu0 %v1040
        %1056 = vmatprep.subr.mxu0 0.0
        %1057 = vmatpush1.msra.mxu0 %v1041
        %1058 = vmatprep.subr.mxu0 0.0
        %1059 = vmatpush1.msra.mxu0 %v1042
        %1060 = vmatprep.subr.mxu0 0.0
        %1061 = vmatpush1.msra.mxu0 %v1043
        %1062 = vmatprep.subr.mxu0 0.0
        %1063 = vmatpush1.msra.mxu0 0.0
        %1064 = vmatprep.subr.mxu0 0.0
        %1065 = vmatpush1.msra.mxu0 0.0
        %1066 = vmatprep.subr.mxu0 0.0
        %1067 = vmatpush1.msra.mxu0 0.0
        %1068 = vmatprep.subr.mxu0 0.0
        %1069 = vmatpush1.msra.mxu0 0.0
        %1070 = vmatprep.subr.mxu0 0.0
        %1071 = vmatpush1.msra.mxu0 0.0
        %1072 = vmatprep.subr.mxu0 0.0
        %1073 = vmatpush1.msra.mxu0 0.0
        %1074 = vmatprep.subr.mxu0 0.0
        %1075 = vmatpush1.msra.mxu0 0.0
        %1076 = vmatprep.subr.mxu0 0.0
        %1077 = vmatpush1.msra.mxu0 0.0
        %1078 = vmatprep.subr.mxu0 0.0
        %1079 = vmatpush1.msra.mxu0 0.0
        %1080 = vmatprep.subr.mxu0 0.0
        %1081 = vmatpush1.msra.mxu0 0.0
        %1082 = vmatprep.subr.mxu0 0.0
        %1083 = vmatpush1.msra.mxu0 0.0
        %1084 = vmatprep.subr.mxu0 0.0
        %1085 = vmatpush1.msra.mxu0 0.0
        %1086 = vmatprep.subr.mxu0 0.0
        %1087 = vmatpush1.msra.mxu0 0.0
        %1088 = vmatprep.subr.mxu0 0.0
        %1089 = vmatpush1.msra.mxu0 0.0
        %1090 = vmatprep.subr.mxu0 0.0
        %1091 = vmatpush1.msra.mxu0 0.0
        %1092 = vmatprep.subr.mxu0 0.0
        %1093 = vmatpush1.msra.mxu0 0.0
        %1094 = vmatprep.subr.mxu0 0.0
        %1095 = vmatpush1.msra.mxu0 0.0
        %1096 = vmatprep.subr.mxu0 0.0
        %1097 = vmatpush1.msra.mxu0 0.0
        %1098 = vmatprep.subr.mxu0 0.0
        %1099 = vmatpush1.msra.mxu0 0.0
        %1100 = vmatprep.subr.mxu0 0.0
        %1101 = vmatpush1.msra.mxu0 0.0
        %1102 = vmatprep.subr.mxu0 0.0
        %1103 = vmatpush1.msra.mxu0 0.0
        %1104 = vmatprep.subr.mxu0 0.0
        %1105 = vmatpush1.msra.mxu0 0.0
        %1106 = vmatprep.subr.mxu0 0.0
        %1107 = vmatpush1.msra.mxu0 0.0
        %1108 = vmatprep.subr.mxu0 0.0
        %1109 = vmatpush1.msra.mxu0 0.0
        %1110 = vmatprep.subr.mxu0 0.0
        %1111 = vmatpush1.msra.mxu0 0.0
        %1112 = vmatprep.subr.mxu0 0.0
        %1113 = vmatpush1.msra.mxu0 0.0
        %1114 = vmatprep.subr.mxu0 0.0
        %1115 = vmatpush1.msra.mxu0 0.0
        %1116 = vmatprep.subr.mxu0 0.0
        %1117 = vmatpush1.msra.mxu0 0.0
        %1118 = vmatprep.mubr.f32.mxu0 0.0
        %1119 = vmatmul.mubr.f32.gmra.mrb[0].mxu0 %v1052
        %v1120 = vpop.f32.mrb[0].mxu0
        %v1121 = vadd.f32 %v1049, %v1120
        %v1122 = vpop.f32.mrb[0].mxu0
        %1123 = vdwg.mxu0
        %1124 = vst.msk [vmem:[%s268] sm:$0xff] %vm281, %v1121
        %s1125 = sand.u32 %s141, 1
        %s1126 = scalar_lea.sflag [#allocation4], %s1125
        %s1127 = sand.u32 %s141, 1
        %s1128 = smul.addr %s1127, 8
        %s1129 = scalar_lea.vmem [#allocation8], %s1128
        // Predicated region
        $region53: #{tpu_custom_call.1} parent=39 // pred_check
          %p1130 = pneg %p151
        $region54: #{tpu_custom_call.1} parent=39 // pred_check_branch
          %1132 = sbr.rel (%p1130) target = $region56
        $region55: #{tpu_custom_call.1} parent=39 // pred_region
          %s1134 = ssub.s32 128, 128
          %1135 = vsyncadd %s1126, %s1134
          %s1136 = smul.addr %s23, 128
          %s1137 = scalar_lea.hbm %s5, %s1136
          %s1139 = sshll.u32 %s1129, 4
          %s1140 = int_to_ptr.vmem [resolvable:$true] %s1139
          %1142 = dma.vmem_to_hbm [thread:$0]  %s1140, 128, %s1137, %s1126
        $region56: #{tpu_custom_call.1} parent=39 // pred_fallthru
          _
      $region40: #{tpu_custom_call.1} parent=5 // pred_fallthru
        _
      %p1143 = scmp.le.s32.totalorder 2, %s18
      // Predicated region
      $region57: #{tpu_custom_call.1} parent=5 // pred_check
        %p1144 = pneg %p1143
      $region58: #{tpu_custom_call.1} parent=5 // pred_check_branch
        %1146 = sbr.rel (%p1144) target = $region60
      $region59: #{tpu_custom_call.1} parent=5 // pred_region
        %s1147 = ssub.s32 %s18, 2
        // Predicated region
        $region61: #{tpu_custom_call.1} parent=59 // pred_check
          %p1148 = pneg %p157
        $region62: #{tpu_custom_call.1} parent=59 // pred_check_branch
          %1150 = sbr.rel (%p1148) target = $region64
        $region63: #{tpu_custom_call.1} parent=59 // pred_region
          %s1151 = sand.u32 %s142, 1
          %s1152 = scalar_lea.sflag [#allocation4], %s1151
          %s1153 = sand.u32 %s142, 1
          %s1154 = smul.addr %s1153, 8
          %s1155 = scalar_lea.vmem [#allocation8], %s1154
          %1156 = dma.done %s1152, 128
        $region64: #{tpu_custom_call.1} parent=59 // pred_fallthru
          _
      $region60: #{tpu_custom_call.1} parent=5 // pred_fallthru
        _
    $region6: #{tpu_custom_call.1} parent=1 // loop_footer
      %s22 = sadd.s32 1, %s18
    $region7: #{tpu_custom_call.1} parent=1 // loop_footer_branch
      %17 = sbr.rel target = $region3
    $region8: #{tpu_custom_call.1} parent=1 // loop_exit
      _
    %1157 = vsyncpa [#allocation3], 1
    %s1158 = scalar_lea.sflag [#allocation3], 1
    %1159 = vsyncpa %s1158, 1
    %1160 = vsyncpa [#allocation6], 1
    %1161 = vsyncpa [#allocation4], 1
    %s1162 = scalar_lea.sflag [#allocation4], 1
    %1163 = vsyncpa %s1162, 1

</llo_original>
